<compile_context>
chip_gen: v6e
topology: v6e:2x2x1
jax: 0.10.0
libtpu: 0.0.40
codegen_flags: <defaults>
</compile_context>

<pallas_src>
import functools

import jax
import jax.numpy as jnp
from jax import lax
from jax.experimental import pallas as pl
from jax.experimental.pallas import tpu as pltpu


def _fitter_kernel(x_ref, w1_ref, b1_ref, ws_ref, bs_ref, wl_ref, bl_ref,
                   outT_ref, *, num_hidden_layers):
    # x_ref:    (TB, 5)    batch-major input tile (no wrapper transpose)
    # w1_ref:   (H, 5)     first linear weight  (out, in)  [torch-native]
    # b1_ref:   (H, 1)     first linear bias (column -> broadcasts over lanes)
    # ws_ref:   (L, H, H)  stacked hidden-layer weights (out, in)
    # bs_ref:   (L, H, 1)  stacked hidden-layer biases
    # wl_ref:   (4, H)     last linear weight
    # bl_ref:   (4, 1)     last linear bias
    # outT_ref: (4, TB)    lane-dense output tile (batch on lanes)
    act_dtype = x_ref.dtype
    x = x_ref[...]                                          # (TB, 5)

    # (H,5) . (TB,5)^T  -> (H, TB): contract the shared feature axis (dim 1
    # of both operands) so x never needs an HBM-side transpose.
    acc = lax.dot_general(
        w1_ref[...], x,
        dimension_numbers=(((1,), (1,)), ((), ())),
        preferred_element_type=jnp.float32)
    h = jnp.tanh((acc + b1_ref[...]).astype(act_dtype))     # (H, TB)

    def layer(i, h):
        acc = jnp.dot(ws_ref[i], h, preferred_element_type=jnp.float32)
        return jnp.tanh((acc + bs_ref[i]).astype(act_dtype))

    if num_hidden_layers <= 8:
        # Short fixed trip count: static unroll gives the scheduler visibility.
        for i in range(num_hidden_layers):
            h = layer(i, h)
    else:
        # Large L: bounded loop body keeps code size / vreg pressure in check.
        h = lax.fori_loop(0, num_hidden_layers, layer, h)

    out = jnp.dot(wl_ref[...], h, preferred_element_type=jnp.float32)
    outT_ref[...] = (out + bl_ref[...]).astype(outT_ref.dtype)


def _pick_tile_b(B, H, *, vmem_budget_bytes=24 << 20, hard_cap=2048):
    """Pick a batch tile (lane) width.

    Largest multiple of 128 dividing B such that the f32 activation
    ping-pong (~2*H*tile_b*4) plus double-buffered I/O tiles stays inside a
    conservative VMEM budget, preferring >= 4 grid steps (>= 2 steps per
    TensorCore on v7x megacore), then >= 2, then whatever divides B.
    """
    assert B % 128 == 0, "pad B to a multiple of 128 before calling"
    per_col_bytes = (2 * H + 2 * (5 + 4)) * 4
    cap = max(128, (vmem_budget_bytes // per_col_bytes) // 128 * 128)
    cap = min(cap, hard_cap)
    candidates = [t for t in range(128, min(B, cap) + 1, 128) if B % t == 0]
    if not candidates:
        return 128
    for min_steps in (4, 2):
        ok = [t for t in candidates if B // t >= min_steps]
        if ok:
            return max(ok)
    return max(candidates)


@functools.partial(jax.jit, static_argnames=("tile_b", "use_bf16"))
def fitter_forward(x, params, *, tile_b=None, use_bf16=False):
    """Fitter MLP forward pass via a Pallas TPU kernel.

    x: (B, 5) float32.
    params: dict with w1 (H,5), b1 (H,1), ws (L,H,H), bs (L,H,1),
            wl (4,H), bl (4,1)  -- torch-native (out, in) weight layout.
    Returns (B, 4) float32.
    """
    B0, in_dim = x.shape
    assert in_dim == 5
    H = params["w1"].shape[0]
    L = params["ws"].shape[0]
    assert L >= 1

    # Pad ragged batches to a multiple of 128: keeps output stores lane-dense
    # and the grid multi-step instead of one serialized full-batch block.
    pad = (-B0) % 128
    if pad:
        x = jnp.pad(x, ((0, pad), (0, 0)))
    B = B0 + pad

    if tile_b is None:
        tile_b = _pick_tile_b(B, H)
    assert B % tile_b == 0 and tile_b % 128 == 0

    # Optional bf16 weights/activations (v6e/v7x); f32 accumulation on dots.
    act_dtype = jnp.bfloat16 if use_bf16 else jnp.float32
    x = x.astype(act_dtype)
    w1 = params["w1"].astype(act_dtype)
    ws = params["ws"].astype(act_dtype)
    wl = params["wl"].astype(act_dtype)
    b1 = params["b1"].astype(jnp.float32)
    bs = params["bs"].astype(jnp.float32)
    bl = params["bl"].astype(jnp.float32)

    kernel = functools.partial(_fitter_kernel, num_hidden_layers=L)

    # Explicit VMEM budget: resident weights are double-buffered by the
    # default pipeline even with constant index maps; add the double-buffered
    # x/out tiles, the f32 activation ping-pong, and headroom. Capped at
    # v7x's 64 MiB physical VMEM; floor above v5e's ~16 MiB default limit.
    w_itemsize = jnp.dtype(act_dtype).itemsize
    weight_bytes = ((w1.size + ws.size + wl.size) * w_itemsize
                    + (b1.size + bs.size + bl.size) * 4)
    io_bytes = 2 * (tile_b * 5 * w_itemsize + 4 * tile_b * 4)
    act_bytes = 2 * H * tile_b * 4
    vmem_limit = int(min(64 << 20,
                         max(32 << 20,
                             2 * weight_bytes + io_bytes + act_bytes + (4 << 20))))

    flops = int(2 * B * (5 * H + L * H * H + 4 * H))
    transcendentals = int(B * H * (L + 1))
    bytes_accessed = int(x.size * w_itemsize + 4 * B * 4 + weight_bytes)

    grid = (B // tile_b,)
    outT = pl.pallas_call(
        kernel,
        out_shape=jax.ShapeDtypeStruct((4, B), jnp.float32),
        grid_spec=pltpu.PrefetchScalarGridSpec(
            num_scalar_prefetch=0,
            grid=grid,
            in_specs=[
                # batch-tiled input, batch-major (no HBM transpose of x)
                pl.BlockSpec((tile_b, 5), lambda i: (i, 0)),
                # weights / biases: full arrays, constant block index for
                # every grid step -> DMA'd once, resident across the grid.
                pl.BlockSpec((H, 5), lambda i: (0, 0)),
                pl.BlockSpec((H, 1), lambda i: (0, 0)),
                pl.BlockSpec((L, H, H), lambda i: (0, 0, 0)),
                pl.BlockSpec((L, H, 1), lambda i: (0, 0, 0)),
                pl.BlockSpec((4, H), lambda i: (0, 0)),
                pl.BlockSpec((4, 1), lambda i: (0, 0)),
            ],
            # lane-dense output tile (last dim = tile_b, multiple of 128)
            out_specs=pl.BlockSpec((4, tile_b), lambda i: (0, i)),
        ),
        compiler_params=pltpu.CompilerParams(
            dimension_semantics=("parallel",),
            vmem_limit_bytes=vmem_limit,
        ),
        cost_estimate=pl.CostEstimate(
            flops=flops,
            transcendentals=transcendentals,
            bytes_accessed=bytes_accessed,
        ),
    )(x, w1, b1, ws, bs, wl, bl)

    # Tiny (4, B) -> (B, 4) layout flip, kept outside the kernel so the
    # in-kernel stores stay lane-dense; under jit it fuses with the consumer.
    out = outT.T
    if pad:
        out = out[:B0]
    return out


def init_params(key, num_hidden_nodes, num_hidden_layers):
    """Deterministic init mimicking torch.nn.Linear default (U[-1/sqrt(fan_in), +]).

    Weights stored torch-native (out_features, in_features); biases as
    (out_features, 1) columns so they broadcast along the lane (batch) axis.
    """
    H = num_hidden_nodes
    L = num_hidden_layers
    keys = jax.random.split(key, 6)

    def uniform(k, shape, fan_in):
        bound = 1.0 / jnp.sqrt(jnp.float32(fan_in))
        return jax.random.uniform(k, shape, jnp.float32, -bound, bound)

    return {
        "w1": uniform(keys[0], (H, 5), 5),
        "b1": uniform(keys[1], (H, 1), 5),
        "ws": uniform(keys[2], (L, H, H), H),
        "bs": uniform(keys[3], (L, H, 1), H),
        "wl": uniform(keys[4], (4, H), H),
        "bl": uniform(keys[5], (4, 1), H),
    }


def fitter_reference(x, params):
    """Pure-JAX reference (standard batch-major layout) for correctness checking."""
    h = jnp.tanh(x @ params["w1"].T + params["b1"].T)
    for i in range(params["ws"].shape[0]):
        h = jnp.tanh(h @ params["ws"][i].T + params["bs"][i].T)
    return h @ params["wl"].T + params["bl"].T


if __name__ == "__main__":
    key = jax.random.PRNGKey(0)
    k_params, k_x = jax.random.split(key)

    num_hidden_nodes = 32
    num_hidden_layers = 2
    batch = 512  # multiple of 128 -> tile_b=128, grid=(4,): >=2 steps per v7x core

    params = init_params(k_params, num_hidden_nodes, num_hidden_layers)
    # Fitter input is 5-dimensional (t, x1_0, y1_0, x2_0, y2_0 style features).
    x = jax.random.normal(k_x, (batch, 5), jnp.float32)

    out = jax.block_until_ready(fitter_forward(x, params))
    ref = fitter_reference(x, params)
    assert out.shape == (batch, 4)
    assert jnp.allclose(out, ref, atol=1e-4, rtol=1e-4), (
        float(jnp.max(jnp.abs(out - ref)))
    )

    # Ragged batch exercises the pad-to-128 path.
    x_small = jax.random.normal(jax.random.PRNGKey(1), (200, 5), jnp.float32)
    out_small = jax.block_until_ready(fitter_forward(x_small, params))
    ref_small = fitter_reference(x_small, params)
    assert out_small.shape == (200, 4)
    assert jnp.allclose(out_small, ref_small, atol=1e-4, rtol=1e-4), (
        float(jnp.max(jnp.abs(out_small - ref_small)))
    )

    print("KERNEL_OK")
</pallas_src>

<mosaic_0001>
module attributes {stable_mosaic.version = 11 : i64} {
  func.func @_fitter_kernel(%arg0: i32, %arg1: memref<128x5xf32, #tpu.memory_space<vmem>>, %arg2: memref<32x5xf32, #tpu.memory_space<vmem>>, %arg3: memref<32x1xf32, #tpu.memory_space<vmem>>, %arg4: memref<2x32x32xf32, #tpu.memory_space<vmem>>, %arg5: memref<2x32x1xf32, #tpu.memory_space<vmem>>, %arg6: memref<4x32xf32, #tpu.memory_space<vmem>>, %arg7: memref<4x1xf32, #tpu.memory_space<vmem>>, %arg8: memref<4x128xf32, #tpu.memory_space<vmem>>) attributes {dimension_semantics = [#tpu.dimension_semantics<parallel>], iteration_bounds = array<i64: 4>, scalar_prefetch = 0 : i64, scratch_operands = 0 : i64, tpu.core_type = #tpu.core_type<tc>, window_params = [{transform_indices = @transform_0, window_bounds = array<i64: 128, 5>}, {pipeline_mode = #tpu.pipeline_mode<synchronous>, transform_indices = @transform_1, window_bounds = array<i64: 32, 5>}, {pipeline_mode = #tpu.pipeline_mode<synchronous>, transform_indices = @transform_2, window_bounds = array<i64: 32, 1>}, {pipeline_mode = #tpu.pipeline_mode<synchronous>, transform_indices = @transform_3, window_bounds = array<i64: 2, 32, 32>}, {pipeline_mode = #tpu.pipeline_mode<synchronous>, transform_indices = @transform_4, window_bounds = array<i64: 2, 32, 1>}, {pipeline_mode = #tpu.pipeline_mode<synchronous>, transform_indices = @transform_5, window_bounds = array<i64: 4, 32>}, {pipeline_mode = #tpu.pipeline_mode<synchronous>, transform_indices = @transform_6, window_bounds = array<i64: 4, 1>}, {transform_indices = @transform_7, window_bounds = array<i64: 4, 128>}]} {
    %c0 = arith.constant 0 : index
    %c0_0 = arith.constant 0 : index
    %0 = vector.load %arg1[%c0, %c0_0] : memref<128x5xf32, #tpu.memory_space<vmem>>, vector<128x5xf32>
    %c0_1 = arith.constant 0 : index
    %c0_2 = arith.constant 0 : index
    %1 = vector.load %arg2[%c0_1, %c0_2] : memref<32x5xf32, #tpu.memory_space<vmem>>, vector<32x5xf32>
    %cst = arith.constant dense<0.000000e+00> : vector<32x128xf32>
    %2 = tpu.matmul %1, %0, %cst {dimension_numbers = #tpu.dot_dimension_numbers<[1], [1], [0], [0], [0, 0, 1, 0], [], []>} : vector<32x5xf32>, vector<128x5xf32>, vector<32x128xf32> -> vector<32x128xf32>
    %c0_3 = arith.constant 0 : index
    %c0_4 = arith.constant 0 : index
    %3 = vector.load %arg3[%c0_3, %c0_4] : memref<32x1xf32, #tpu.memory_space<vmem>>, vector<32x1xf32>
    %4 = vector.broadcast %3 : vector<32x1xf32> to vector<32x128xf32>
    %5 = arith.addf %2, %4 : vector<32x128xf32>
    %6 = math.tanh %5 : vector<32x128xf32>
    %c0_5 = arith.constant 0 : index
    %c0_6 = arith.constant 0 : index
    %c0_7 = arith.constant 0 : index
    %7 = vector.load %arg4[%c0_5, %c0_6, %c0_7] : memref<2x32x32xf32, #tpu.memory_space<vmem>>, vector<1x32x32xf32>
    %8 = vector.shape_cast %7 : vector<1x32x32xf32> to vector<32x32xf32>
    %cst_8 = arith.constant dense<0.000000e+00> : vector<32x128xf32>
    %9 = tpu.matmul %8, %6, %cst_8 {dimension_numbers = #tpu.dot_dimension_numbers<[1], [0], [0], [1], [0, 0, 1, 1], [], []>} : vector<32x32xf32>, vector<32x128xf32>, vector<32x128xf32> -> vector<32x128xf32>
    %c0_9 = arith.constant 0 : index
    %c0_10 = arith.constant 0 : index
    %c0_11 = arith.constant 0 : index
    %10 = vector.load %arg5[%c0_9, %c0_10, %c0_11] : memref<2x32x1xf32, #tpu.memory_space<vmem>>, vector<1x32x1xf32>
    %11 = vector.shape_cast %10 : vector<1x32x1xf32> to vector<32x1xf32>
    %12 = vector.broadcast %11 : vector<32x1xf32> to vector<32x128xf32>
    %13 = arith.addf %9, %12 : vector<32x128xf32>
    %14 = math.tanh %13 : vector<32x128xf32>
    %c1 = arith.constant 1 : index
    %c0_12 = arith.constant 0 : index
    %c0_13 = arith.constant 0 : index
    %15 = vector.load %arg4[%c1, %c0_12, %c0_13] : memref<2x32x32xf32, #tpu.memory_space<vmem>>, vector<1x32x32xf32>
    %16 = vector.shape_cast %15 : vector<1x32x32xf32> to vector<32x32xf32>
    %cst_14 = arith.constant dense<0.000000e+00> : vector<32x128xf32>
    %17 = tpu.matmul %16, %14, %cst_14 {dimension_numbers = #tpu.dot_dimension_numbers<[1], [0], [0], [1], [0, 0, 1, 1], [], []>} : vector<32x32xf32>, vector<32x128xf32>, vector<32x128xf32> -> vector<32x128xf32>
    %c1_15 = arith.constant 1 : index
    %c0_16 = arith.constant 0 : index
    %c0_17 = arith.constant 0 : index
    %18 = vector.load %arg5[%c1_15, %c0_16, %c0_17] : memref<2x32x1xf32, #tpu.memory_space<vmem>>, vector<1x32x1xf32>
    %19 = vector.shape_cast %18 : vector<1x32x1xf32> to vector<32x1xf32>
    %20 = vector.broadcast %19 : vector<32x1xf32> to vector<32x128xf32>
    %21 = arith.addf %17, %20 : vector<32x128xf32>
    %22 = math.tanh %21 : vector<32x128xf32>
    %c0_18 = arith.constant 0 : index
    %c0_19 = arith.constant 0 : index
    %23 = vector.load %arg6[%c0_18, %c0_19] : memref<4x32xf32, #tpu.memory_space<vmem>>, vector<4x32xf32>
    %cst_20 = arith.constant dense<0.000000e+00> : vector<4x128xf32>
    %24 = tpu.matmul %23, %22, %cst_20 {dimension_numbers = #tpu.dot_dimension_numbers<[1], [0], [0], [1], [0, 0, 1, 1], [], []>} : vector<4x32xf32>, vector<32x128xf32>, vector<4x128xf32> -> vector<4x128xf32>
    %c0_21 = arith.constant 0 : index
    %c0_22 = arith.constant 0 : index
    %25 = vector.load %arg7[%c0_21, %c0_22] : memref<4x1xf32, #tpu.memory_space<vmem>>, vector<4x1xf32>
    %26 = vector.broadcast %25 : vector<4x1xf32> to vector<4x128xf32>
    %27 = arith.addf %24, %26 : vector<4x128xf32>
    %c0_23 = arith.constant 0 : index
    %c0_24 = arith.constant 0 : index
    %28 = vector.load %arg8[%c0_23, %c0_24] : memref<4x128xf32, #tpu.memory_space<vmem>>, vector<4x128xf32>
    tpu.vector_store %arg8[%c0_23, %c0_24], %27 {strides = array<i32>} : memref<4x128xf32, #tpu.memory_space<vmem>>, vector<4x128xf32>,
    return
  }
  func.func @transform_0(%arg0: i32) -> (i32, i32) {
    %c0_i32 = arith.constant 0 : i32
    %c0_i32_0 = arith.constant 0 : i32
    return %arg0, %c0_i32 : i32, i32
  }
  func.func @transform_1(%arg0: i32) -> (i32, i32) {
    %c0_i32 = arith.constant 0 : i32
    %c0_i32_0 = arith.constant 0 : i32
    %c0_i32_1 = arith.constant 0 : i32
    return %c0_i32, %c0_i32_0 : i32, i32
  }
  func.func @transform_2(%arg0: i32) -> (i32, i32) {
    %c0_i32 = arith.constant 0 : i32
    %c0_i32_0 = arith.constant 0 : i32
    %c0_i32_1 = arith.constant 0 : i32
    return %c0_i32, %c0_i32_0 : i32, i32
  }
  func.func @transform_3(%arg0: i32) -> (i32, i32, i32) {
    %c0_i32 = arith.constant 0 : i32
    %c0_i32_0 = arith.constant 0 : i32
    %c0_i32_1 = arith.constant 0 : i32
    %c0_i32_2 = arith.constant 0 : i32
    return %c0_i32, %c0_i32_0, %c0_i32_1 : i32, i32, i32
  }
  func.func @transform_4(%arg0: i32) -> (i32, i32, i32) {
    %c0_i32 = arith.constant 0 : i32
    %c0_i32_0 = arith.constant 0 : i32
    %c0_i32_1 = arith.constant 0 : i32
    %c0_i32_2 = arith.constant 0 : i32
    return %c0_i32, %c0_i32_0, %c0_i32_1 : i32, i32, i32
  }
  func.func @transform_5(%arg0: i32) -> (i32, i32) {
    %c0_i32 = arith.constant 0 : i32
    %c0_i32_0 = arith.constant 0 : i32
    %c0_i32_1 = arith.constant 0 : i32
    return %c0_i32, %c0_i32_0 : i32, i32
  }
  func.func @transform_6(%arg0: i32) -> (i32, i32) {
    %c0_i32 = arith.constant 0 : i32
    %c0_i32_0 = arith.constant 0 : i32
    %c0_i32_1 = arith.constant 0 : i32
    return %c0_i32, %c0_i32_0 : i32, i32
  }
  func.func @transform_7(%arg0: i32) -> (i32, i32) {
    %c0_i32 = arith.constant 0 : i32
    %c0_i32_0 = arith.constant 0 : i32
    return %c0_i32, %arg0 : i32, i32
  }
}

</mosaic_0001>

<llo_original>
// kernel: fitter_forward.1
$region0: #{fitter_forward.1}
  #allocation0 [shape = 'u32[]', space=smem, size = 0x4, offset = 0x4, fixed_abs, tag = 'smem constant byte address 0x4 - core index']
  #allocation1 [shape = 'u32[144,128]{1,0:T(1,128)}', space=vmem, size = 0x12000, scoped, tag = 'internal scratch']
  %s0 = inlined_call_operand.vmem [shape: f32[512,5], index: 0, kind: input, shape index: {}]
  %s1 = inlined_call_operand.vmem [shape: f32[32,5], index: 1, kind: input, shape index: {}]
  %s2 = inlined_call_operand.vmem [shape: f32[32,1], index: 2, kind: input, shape index: {}]
  %s3 = inlined_call_operand.vmem [shape: f32[2,32,32], index: 3, kind: input, shape index: {}]
  %s4 = inlined_call_operand.vmem [shape: f32[2,32,1], index: 4, kind: input, shape index: {}]
  %s5 = inlined_call_operand.vmem [shape: f32[4,32], index: 5, kind: input, shape index: {}]
  %s6 = inlined_call_operand.vmem [shape: f32[4,1], index: 6, kind: input, shape index: {}]
  %s7 = inlined_call_operand.hbm [shape: f32[4,512], index: 7, kind: output, shape index: {}]
  %s8 = sld [smem:[#allocation0]]
  $region61: #{fitter_forward.1} parent=0
    _
  %s10 = ssub.s32 1, %s8
  %s11 = scalar_select 0, %s10, %s8
  $region1: #{fitter_forward.1} parent=0
    #allocation2 [shape = 'u8[4096]{0}', space=vmem, size = 0x1000, scoped, tag = 'output window, operand 0']
    #allocation3 [shape = 's32[2]{0}', space=sflag, size = 0x8, scoped, tag = 'scoped memory for fitter_forward.1']
    %12 = vsyncpa [#allocation3], 0
    %s13 = scalar_lea.sflag [#allocation3], 1
    %14 = vsyncpa %s13, 0
    loop: start=0, step=1, limit=6
    $region2: #{fitter_forward.1} parent=1 // loop_pre_header
      _
    $region3: #{fitter_forward.1} parent=1 // loop_header
      %s16 = sphi 0, %s20
      %p17 = scmp.ge.s32.totalorder %s16, 6
      %s26 = sphi 0, %s28
      %s29 = sphi 0, %s26
      %s30 = sphi 0, %s29
      %s46 = sphi 0, %s30
      %s50 = sphi 0, %s50
      %s52 = sphi 0, %s50
      %s53 = sphi 0, %s52
      %s67 = sphi 0, %s53
      %s71 = sphi 0, %s71
      %s73 = sphi 0, %s71
      %s74 = sphi 0, %s73
      %s88 = sphi 0, %s74
      %s92 = sphi 0, %s92
      %s94 = sphi 0, %s92
      %s95 = sphi 0, %s94
      %s109 = sphi 0, %s95
      %s113 = sphi 0, %s113
      %s115 = sphi 0, %s113
      %s116 = sphi 0, %s115
      %s130 = sphi 0, %s116
      %s134 = sphi 0, %s134
      %s136 = sphi 0, %s134
      %s137 = sphi 0, %s136
      %s151 = sphi 0, %s137
      %s155 = sphi 0, %s155
      %s157 = sphi 0, %s155
      %s158 = sphi 0, %s157
      %s172 = sphi 0, %s158
      %s178 = sphi 0, %s180
      %s181 = sphi 0, %s178
      %s182 = sphi 0, %s181
      %s198 = sphi 0, %s182
    $region4: #{fitter_forward.1} parent=1 // loop_header_branch
      %19 = sbr.rel (%p17) target = $region8
    $region5: #{fitter_forward.1} parent=1 // loop_body
      %s21 = ssub.s32 %s16, 1
      %s22 = ssub.s32 %s16, 2
      %s23 = sadd.s32 %s16, 1
      %s24 = ssub.s32 %s16, %s23
      %p25 = scmp.eq.s32.totalorder %s24, 0
      %s27 = sadd.s32 %s26, 1
      %s28 = scalar_select %p25, %s26, %s27
      %p31 = pneg %p25
      %p32 = scmp.eq.s32.totalorder %s16, 3
      %p33 = por %p31, %p32
      %p34 = scmp.ne.s32.totalorder %s26, %s29
      %p35 = scmp.eq.s32.totalorder %s16, 0
      %p36 = por %p34, %p35
      %p37 = scmp.ne.s32.totalorder %s26, %s29
      %p38 = scmp.eq.s32.totalorder %s21, 3
      %p39 = por %p37, %p38
      %p40 = scmp.ne.s32.totalorder %s29, %s30
      %p41 = scmp.eq.s32.totalorder %s21, 0
      %p42 = por %p40, %p41
      %p43 = scmp.ne.s32.totalorder %s29, %s30
      %p44 = scmp.eq.s32.totalorder %s22, 3
      %p45 = por %p43, %p44
      %p47 = scmp.ne.s32.totalorder %s30, %s46
      %p48 = scmp.eq.s32.totalorder %s22, 0
      %p49 = por %p47, %p48
      %s51 = sadd.s32 %s50, 1
      %p54 = scmp.eq.s32.totalorder %s16, 3
      %p55 = scmp.ne.s32.totalorder %s50, %s52
      %p56 = scmp.eq.s32.totalorder %s16, 0
      %p57 = por %p55, %p56
      %p58 = scmp.ne.s32.totalorder %s50, %s52
      %p59 = scmp.eq.s32.totalorder %s21, 3
      %p60 = por %p58, %p59
      %p61 = scmp.ne.s32.totalorder %s52, %s53
      %p62 = scmp.eq.s32.totalorder %s21, 0
      %p63 = por %p61, %p62
      %p64 = scmp.ne.s32.totalorder %s52, %s53
      %p65 = scmp.eq.s32.totalorder %s22, 3
      %p66 = por %p64, %p65
      %p68 = scmp.ne.s32.totalorder %s53, %s67
      %p69 = scmp.eq.s32.totalorder %s22, 0
      %p70 = por %p68, %p69
      %s72 = sadd.s32 %s71, 1
      %p75 = scmp.eq.s32.totalorder %s16, 3
      %p76 = scmp.ne.s32.totalorder %s71, %s73
      %p77 = scmp.eq.s32.totalorder %s16, 0
      %p78 = por %p76, %p77
      %p79 = scmp.ne.s32.totalorder %s71, %s73
      %p80 = scmp.eq.s32.totalorder %s21, 3
      %p81 = por %p79, %p80
      %p82 = scmp.ne.s32.totalorder %s73, %s74
      %p83 = scmp.eq.s32.totalorder %s21, 0
      %p84 = por %p82, %p83
      %p85 = scmp.ne.s32.totalorder %s73, %s74
      %p86 = scmp.eq.s32.totalorder %s22, 3
      %p87 = por %p85, %p86
      %p89 = scmp.ne.s32.totalorder %s74, %s88
      %p90 = scmp.eq.s32.totalorder %s22, 0
      %p91 = por %p89, %p90
      %s93 = sadd.s32 %s92, 1
      %p96 = scmp.eq.s32.totalorder %s16, 3
      %p97 = scmp.ne.s32.totalorder %s92, %s94
      %p98 = scmp.eq.s32.totalorder %s16, 0
      %p99 = por %p97, %p98
      %p100 = scmp.ne.s32.totalorder %s92, %s94
      %p101 = scmp.eq.s32.totalorder %s21, 3
      %p102 = por %p100, %p101
      %p103 = scmp.ne.s32.totalorder %s94, %s95
      %p104 = scmp.eq.s32.totalorder %s21, 0
      %p105 = por %p103, %p104
      %p106 = scmp.ne.s32.totalorder %s94, %s95
      %p107 = scmp.eq.s32.totalorder %s22, 3
      %p108 = por %p106, %p107
      %p110 = scmp.ne.s32.totalorder %s95, %s109
      %p111 = scmp.eq.s32.totalorder %s22, 0
      %p112 = por %p110, %p111
      %s114 = sadd.s32 %s113, 1
      %p117 = scmp.eq.s32.totalorder %s16, 3
      %p118 = scmp.ne.s32.totalorder %s113, %s115
      %p119 = scmp.eq.s32.totalorder %s16, 0
      %p120 = por %p118, %p119
      %p121 = scmp.ne.s32.totalorder %s113, %s115
      %p122 = scmp.eq.s32.totalorder %s21, 3
      %p123 = por %p121, %p122
      %p124 = scmp.ne.s32.totalorder %s115, %s116
      %p125 = scmp.eq.s32.totalorder %s21, 0
      %p126 = por %p124, %p125
      %p127 = scmp.ne.s32.totalorder %s115, %s116
      %p128 = scmp.eq.s32.totalorder %s22, 3
      %p129 = por %p127, %p128
      %p131 = scmp.ne.s32.totalorder %s116, %s130
      %p132 = scmp.eq.s32.totalorder %s22, 0
      %p133 = por %p131, %p132
      %s135 = sadd.s32 %s134, 1
      %p138 = scmp.eq.s32.totalorder %s16, 3
      %p139 = scmp.ne.s32.totalorder %s134, %s136
      %p140 = scmp.eq.s32.totalorder %s16, 0
      %p141 = por %p139, %p140
      %p142 = scmp.ne.s32.totalorder %s134, %s136
      %p143 = scmp.eq.s32.totalorder %s21, 3
      %p144 = por %p142, %p143
      %p145 = scmp.ne.s32.totalorder %s136, %s137
      %p146 = scmp.eq.s32.totalorder %s21, 0
      %p147 = por %p145, %p146
      %p148 = scmp.ne.s32.totalorder %s136, %s137
      %p149 = scmp.eq.s32.totalorder %s22, 3
      %p150 = por %p148, %p149
      %p152 = scmp.ne.s32.totalorder %s137, %s151
      %p153 = scmp.eq.s32.totalorder %s22, 0
      %p154 = por %p152, %p153
      %s156 = sadd.s32 %s155, 1
      %p159 = scmp.eq.s32.totalorder %s16, 3
      %p160 = scmp.ne.s32.totalorder %s155, %s157
      %p161 = scmp.eq.s32.totalorder %s16, 0
      %p162 = por %p160, %p161
      %p163 = scmp.ne.s32.totalorder %s155, %s157
      %p164 = scmp.eq.s32.totalorder %s21, 3
      %p165 = por %p163, %p164
      %p166 = scmp.ne.s32.totalorder %s157, %s158
      %p167 = scmp.eq.s32.totalorder %s21, 0
      %p168 = por %p166, %p167
      %p169 = scmp.ne.s32.totalorder %s157, %s158
      %p170 = scmp.eq.s32.totalorder %s22, 3
      %p171 = por %p169, %p170
      %p173 = scmp.ne.s32.totalorder %s158, %s172
      %p174 = scmp.eq.s32.totalorder %s22, 0
      %p175 = por %p173, %p174
      %s176 = ssub.s32 %s16, %s23
      %p177 = scmp.eq.s32.totalorder %s176, 0
      %s179 = sadd.s32 %s178, 1
      %s180 = scalar_select %p177, %s178, %s179
      %p183 = pneg %p177
      %p184 = scmp.eq.s32.totalorder %s16, 3
      %p185 = por %p183, %p184
      %p186 = scmp.ne.s32.totalorder %s178, %s181
      %p187 = scmp.eq.s32.totalorder %s16, 0
      %p188 = por %p186, %p187
      %p189 = scmp.ne.s32.totalorder %s178, %s181
      %p190 = scmp.eq.s32.totalorder %s21, 3
      %p191 = por %p189, %p190
      %p192 = scmp.ne.s32.totalorder %s181, %s182
      %p193 = scmp.eq.s32.totalorder %s21, 0
      %p194 = por %p192, %p193
      %p195 = scmp.ne.s32.totalorder %s181, %s182
      %p196 = scmp.eq.s32.totalorder %s22, 3
      %p197 = por %p195, %p196
      %p199 = scmp.ne.s32.totalorder %s182, %s198
      %p200 = scmp.eq.s32.totalorder %s22, 0
      %p201 = por %p199, %p200
      %p202 = scmp.le.s32.totalorder 1, %s16
      %p203 = scmp.lt.s32.totalorder %s16, 5
      %p204 = pnand %p202, %p203
      %p205 = pneg %p204
      // Predicated region
      $region9: #{fitter_forward.1} parent=5 // pred_check
        _
      $region10: #{fitter_forward.1} parent=5 // pred_check_branch
        %207 = sbr.rel (%p204) target = $region12
      $region11: #{fitter_forward.1} parent=5 // pred_region
        %s208 = ssub.s32 %s16, 1
        // Predicated region
        $region13: #{fitter_forward.1} parent=11 // pred_check
          %p209 = pneg %p63
        $region14: #{fitter_forward.1} parent=11 // pred_check_branch
          %211 = sbr.rel (%p209) target = $region16
        $region15: #{fitter_forward.1} parent=11 // pred_region
          _
        $region16: #{fitter_forward.1} parent=11 // pred_fallthru
          _
        // Predicated region
        $region17: #{fitter_forward.1} parent=11 // pred_check
          %p212 = pneg %p84
        $region18: #{fitter_forward.1} parent=11 // pred_check_branch
          %214 = sbr.rel (%p212) target = $region20
        $region19: #{fitter_forward.1} parent=11 // pred_region
          _
        $region20: #{fitter_forward.1} parent=11 // pred_fallthru
          _
        // Predicated region
        $region21: #{fitter_forward.1} parent=11 // pred_check
          %p215 = pneg %p105
        $region22: #{fitter_forward.1} parent=11 // pred_check_branch
          %217 = sbr.rel (%p215) target = $region24
        $region23: #{fitter_forward.1} parent=11 // pred_region
          _
        $region24: #{fitter_forward.1} parent=11 // pred_fallthru
          _
        // Predicated region
        $region25: #{fitter_forward.1} parent=11 // pred_check
          %p218 = pneg %p126
        $region26: #{fitter_forward.1} parent=11 // pred_check_branch
          %220 = sbr.rel (%p218) target = $region28
        $region27: #{fitter_forward.1} parent=11 // pred_region
          _
        $region28: #{fitter_forward.1} parent=11 // pred_fallthru
          _
        // Predicated region
        $region29: #{fitter_forward.1} parent=11 // pred_check
          %p221 = pneg %p147
        $region30: #{fitter_forward.1} parent=11 // pred_check_branch
          %223 = sbr.rel (%p221) target = $region32
        $region31: #{fitter_forward.1} parent=11 // pred_region
          _
        $region32: #{fitter_forward.1} parent=11 // pred_fallthru
          _
        // Predicated region
        $region33: #{fitter_forward.1} parent=11 // pred_check
          %p224 = pneg %p168
        $region34: #{fitter_forward.1} parent=11 // pred_check_branch
          %226 = sbr.rel (%p224) target = $region36
        $region35: #{fitter_forward.1} parent=11 // pred_region
          _
        $region36: #{fitter_forward.1} parent=11 // pred_fallthru
          _
      $region12: #{fitter_forward.1} parent=5 // pred_fallthru
        _
      %p227 = scmp.lt.s32.totalorder %s16, 4
      // Predicated region
      $region37: #{fitter_forward.1} parent=5 // pred_check
        %p228 = pneg %p227
      $region38: #{fitter_forward.1} parent=5 // pred_check_branch
        %230 = sbr.rel (%p228) target = $region40
      $region39: #{fitter_forward.1} parent=5 // pred_region
        // Predicated region
        $region41: #{fitter_forward.1} parent=39 // pred_check
          %p231 = pneg %p36
        $region42: #{fitter_forward.1} parent=39 // pred_check_branch
          %233 = sbr.rel (%p231) target = $region44
        $region43: #{fitter_forward.1} parent=39 // pred_region
          %s234 = smul.u32 16, %s16
          %p235 = scmp.lt.s32.totalorder %s234, 63
          %s236 = scalar_select %p235, %s234, 63
          %s237 = smul.addr %s236, 8
          %s238 = scalar_lea.vmem %s0, %s237
          %s239 = smul.u32 16, %s16
        $region44: #{fitter_forward.1} parent=39 // pred_fallthru
          _
      $region40: #{fitter_forward.1} parent=5 // pred_fallthru
        _
      %p240 = scmp.le.s32.totalorder 1, %s16
      %p241 = scmp.lt.s32.totalorder %s16, 5
      %p242 = pnand %p240, %p241
      %p243 = pneg %p242
      // Predicated region
      $region45: #{fitter_forward.1} parent=5 // pred_check
        _
      $region46: #{fitter_forward.1} parent=5 // pred_check_branch
        %245 = sbr.rel (%p242) target = $region48
      $region47: #{fitter_forward.1} parent=5 // pred_region
        %s246 = ssub.s32 %s16, 1
        %s247 = smul.u32 16, %s21
        %p248 = scmp.lt.s32.totalorder %s247, 63
        %s249 = scalar_select %p248, %s247, 63
        %s250 = smul.addr %s249, 8
        %s251 = scalar_lea.vmem %s0, %s250
        %p252 = pneg %p42
        %p253 = pneg %p39
        %p254 = pneg %p63
        %p255 = pneg %p60
        %p256 = pneg %p84
        %p257 = pneg %p81
        %p258 = pneg %p105
        %p259 = pneg %p102
        %p260 = pneg %p126
        %p261 = pneg %p123
        %p262 = pneg %p147
        %p263 = pneg %p144
        %p264 = pneg %p168
        %p265 = pneg %p165
        %p266 = pneg %p194
        %p267 = pneg %p191
        %s268 = sand.u32 %s181, 1
        %s269 = scalar_lea.sflag [#allocation3], %s268
        %s270 = sand.u32 %s181, 1
        %s271 = smul.addr %s270, 4
        %s272 = scalar_lea.vmem [#allocation2], %s271
        %s273 = smul.u32 16, %s21
        %p274 = scmp.lt.s32.totalorder %s273, 63
        %s275 = scalar_select %p274, %s273, 63
        %s276 = smul.addr %s275, 8
        %s277 = scalar_lea.vmem %s0, %s276
        %s278 = smul.u32 16, %s21
        %v279 = vld [vmem:[%s277] sm:$0xff]
        %v280 = vld [vmem:[%s277 + $0x8] sm:$0xff]
        %v281 = vld [vmem:[%s277 + $0x10] sm:$0xff]
        %v282 = vld [vmem:[%s277 + $0x18] sm:$0xff]
        %v283 = vld [vmem:[%s277 + $0x20] sm:$0xff]
        %v284 = vld [vmem:[%s277 + $0x28] sm:$0xff]
        %v285 = vld [vmem:[%s277 + $0x30] sm:$0xff]
        %v286 = vld [vmem:[%s277 + $0x38] sm:$0xff]
        %v287 = vld [vmem:[%s277 + $0x40] sm:$0xff]
        %v288 = vld [vmem:[%s277 + $0x48] sm:$0xff]
        %v289 = vld [vmem:[%s277 + $0x50] sm:$0xff]
        %v290 = vld [vmem:[%s277 + $0x58] sm:$0xff]
        %v291 = vld [vmem:[%s277 + $0x60] sm:$0xff]
        %v292 = vld [vmem:[%s277 + $0x68] sm:$0xff]
        %v293 = vld [vmem:[%s277 + $0x70] sm:$0xff]
        %v294 = vld [vmem:[%s277 + $0x78] sm:$0xff]
        %v295 = vld [vmem:[%s1] sm:$0xff]
        %v296 = vld [vmem:[%s1 + $0x8] sm:$0xff]
        %v297 = vld [vmem:[%s1 + $0x10] sm:$0xff]
        %v298 = vld [vmem:[%s1 + $0x18] sm:$0xff]
        %v299 = vld [vmem:[%s2] sm:$0xff]
        %v300 = vld [vmem:[%s2 + $0x8] sm:$0xff]
        %v301 = vld [vmem:[%s2 + $0x10] sm:$0xff]
        %v302 = vld [vmem:[%s2 + $0x18] sm:$0xff]
        %304 = vset.pattern.permute.xlu0 0
        %305 = vperm.xlu0 %304, %v299
        %v306 = vpop.permute.xlu0 %305
        %309 = vset.pattern.permute.xlu0 0
        %310 = vperm.xlu0 %309, %v300
        %v311 = vpop.permute.xlu0 %310
        %314 = vset.pattern.permute.xlu0 0
        %315 = vperm.xlu0 %314, %v301
        %v316 = vpop.permute.xlu0 %315
        %319 = vset.pattern.permute.xlu0 0
        %320 = vperm.xlu0 %319, %v302
        %v321 = vpop.permute.xlu0 %320
        %vm323 = vcmask 39936
        %v325 = vsel %vm323, %v295, 0
        %v328 = vsel %vm323, %v296, 0
        %v331 = vsel %vm323, %v297, 0
        %v334 = vsel %vm323, %v298, 0
        %v337 = vsel %vm323, %v279, 0
        %v340 = vsel %vm323, %v280, 0
        %v343 = vsel %vm323, %v281, 0
        %v346 = vsel %vm323, %v282, 0
        %v349 = vsel %vm323, %v283, 0
        %v352 = vsel %vm323, %v284, 0
        %v355 = vsel %vm323, %v285, 0
        %v358 = vsel %vm323, %v286, 0
        %v361 = vsel %vm323, %v287, 0
        %v364 = vsel %vm323, %v288, 0
        %v367 = vsel %vm323, %v289, 0
        %v370 = vsel %vm323, %v290, 0
        %v373 = vsel %vm323, %v291, 0
        %v376 = vsel %vm323, %v292, 0
        %v379 = vsel %vm323, %v293, 0
        %v382 = vsel %vm323, %v294, 0
        %384 = vmatprep.subr.mxu0 0.0
        %385 = vmatpush1.xpose.msra.mxu0 %v382
        %386 = vmatprep.subr.mxu0 0.0
        %387 = vmatpush1.xpose.msra.mxu0 %v379
        %388 = vmatprep.subr.mxu0 0.0
        %389 = vmatpush1.xpose.msra.mxu0 %v376
        %390 = vmatprep.subr.mxu0 0.0
        %391 = vmatpush1.xpose.msra.mxu0 %v373
        %392 = vmatprep.subr.mxu0 0.0
        %393 = vmatpush1.xpose.msra.mxu0 %v370
        %394 = vmatprep.subr.mxu0 0.0
        %395 = vmatpush1.xpose.msra.mxu0 %v367
        %396 = vmatprep.subr.mxu0 0.0
        %397 = vmatpush1.xpose.msra.mxu0 %v364
        %398 = vmatprep.subr.mxu0 0.0
        %399 = vmatpush1.xpose.msra.mxu0 %v361
        %400 = vmatprep.subr.mxu0 0.0
        %401 = vmatpush1.xpose.msra.mxu0 %v358
        %402 = vmatprep.subr.mxu0 0.0
        %403 = vmatpush1.xpose.msra.mxu0 %v355
        %404 = vmatprep.subr.mxu0 0.0
        %405 = vmatpush1.xpose.msra.mxu0 %v352
        %406 = vmatprep.subr.mxu0 0.0
        %407 = vmatpush1.xpose.msra.mxu0 %v349
        %408 = vmatprep.subr.mxu0 0.0
        %409 = vmatpush1.xpose.msra.mxu0 %v346
        %410 = vmatprep.subr.mxu0 0.0
        %411 = vmatpush1.xpose.msra.mxu0 %v343
        %412 = vmatprep.subr.mxu0 0.0
        %413 = vmatpush1.xpose.msra.mxu0 %v340
        %414 = vmatprep.subr.mxu0 0.0
        %415 = vmatpush1.xpose.msra.mxu0 %v337
        %416 = vmatprep.subr.mxu0 0.0
        %417 = vmatpush2.xpose.msra.mxu0 0.0
        %418 = vmatprep.subr.mxu0 0.0
        %419 = vmatpush2.xpose.msra.mxu0 0.0
        %420 = vmatprep.subr.mxu0 0.0
        %421 = vmatpush2.xpose.msra.mxu0 0.0
        %422 = vmatprep.subr.mxu0 0.0
        %423 = vmatpush2.xpose.msra.mxu0 0.0
        %424 = vmatprep.subr.mxu0 0.0
        %425 = vmatpush2.xpose.msra.mxu0 0.0
        %426 = vmatprep.subr.mxu0 0.0
        %427 = vmatpush2.xpose.msra.mxu0 0.0
        %428 = vmatprep.subr.mxu0 0.0
        %429 = vmatpush2.xpose.msra.mxu0 0.0
        %430 = vmatprep.subr.mxu0 0.0
        %431 = vmatpush2.xpose.msra.mxu0 0.0
        %432 = vmatprep.subr.mxu0 0.0
        %433 = vmatpush2.xpose.msra.mxu0 0.0
        %434 = vmatprep.subr.mxu0 0.0
        %435 = vmatpush2.xpose.msra.mxu0 0.0
        %436 = vmatprep.subr.mxu0 0.0
        %437 = vmatpush2.xpose.msra.mxu0 0.0
        %438 = vmatprep.subr.mxu0 0.0
        %439 = vmatpush2.xpose.msra.mxu0 0.0
        %440 = vmatprep.subr.mxu0 0.0
        %441 = vmatpush2.xpose.msra.mxu0 0.0
        %442 = vmatprep.subr.mxu0 0.0
        %443 = vmatpush2.xpose.msra.mxu0 0.0
        %444 = vmatprep.subr.mxu0 0.0
        %445 = vmatpush2.xpose.msra.mxu0 0.0
        %446 = vmatprep.subr.mxu0 0.0
        %447 = vmatpush2.xpose.msra.mxu0 0.0
        %448 = vmatprep.mubr.f32.mxu0 0.0
        %449 = vmatmul.mubr.f32.gmra.mxu0 %v325
        %v450 = vpop.f32.mrf.mxu0
        %v451 = vadd.f32 %v306, %v450
        %v452 = vpop.f32.mrf.mxu0
        %453 = vmatprep.mubr.f32.mxu0 0.0
        %454 = vmatmul.mubr.f32.gmra.mxu0 %v328
        %v455 = vpop.f32.mrf.mxu0
        %v456 = vadd.f32 %v311, %v455
        %v457 = vpop.f32.mrf.mxu0
        %458 = vmatprep.mubr.f32.mxu0 0.0
        %459 = vmatmul.mubr.f32.gmra.mxu0 %v331
        %v460 = vpop.f32.mrf.mxu0
        %v461 = vadd.f32 %v316, %v460
        %v462 = vpop.f32.mrf.mxu0
        %463 = vmatprep.mubr.f32.mxu0 0.0
        %464 = vmatmul.mubr.f32.gmra.mxu0 %v334
        %v465 = vpop.f32.mrf.mxu0
        %v466 = vadd.f32 %v321, %v465
        %v467 = vpop.f32.mrf.mxu0
        %468 = vdwg.mxu0
        %v469 = vtanh.pop %v451
        %v470 = vtanh.pop %v456
        %v471 = vtanh.pop %v461
        %v472 = vtanh.pop %v466
        %v473 = vld [vmem:[%s3] sm:$0xff]
        %v474 = vld [vmem:[%s3 + $0x8] sm:$0xff]
        %v475 = vld [vmem:[%s3 + $0x10] sm:$0xff]
        %v476 = vld [vmem:[%s3 + $0x18] sm:$0xff]
        %v477 = vld [vmem:[%s4] sm:$0xff]
        %v478 = vld [vmem:[%s4 + $0x8] sm:$0xff]
        %v479 = vld [vmem:[%s4 + $0x10] sm:$0xff]
        %v480 = vld [vmem:[%s4 + $0x18] sm:$0xff]
        %482 = vset.pattern.permute.xlu0 0
        %483 = vperm.xlu0 %482, %v477
        %v484 = vpop.permute.xlu0 %483
        %487 = vset.pattern.permute.xlu0 0
        %488 = vperm.xlu0 %487, %v478
        %v489 = vpop.permute.xlu0 %488
        %492 = vset.pattern.permute.xlu0 0
        %493 = vperm.xlu0 %492, %v479
        %v494 = vpop.permute.xlu0 %493
        %497 = vset.pattern.permute.xlu0 0
        %498 = vperm.xlu0 %497, %v480
        %v499 = vpop.permute.xlu0 %498
        %vm501 = vcmask 261120
        %v503 = vsel %vm501, %v473, 0
        %v506 = vsel %vm501, %v474, 0
        %v509 = vsel %vm501, %v475, 0
        %v512 = vsel %vm501, %v476, 0
        %514 = vmatprep.subr.mxu0 0.0
        %515 = vmatpush1.msra.mxu0 0.0
        %516 = vmatprep.subr.mxu0 0.0
        %517 = vmatpush1.msra.mxu0 0.0
        %518 = vmatprep.subr.mxu0 0.0
        %519 = vmatpush1.msra.mxu0 0.0
        %520 = vmatprep.subr.mxu0 0.0
        %521 = vmatpush1.msra.mxu0 0.0
        %522 = vmatprep.subr.mxu0 0.0
        %523 = vmatpush1.msra.mxu0 0.0
        %524 = vmatprep.subr.mxu0 0.0
        %525 = vmatpush1.msra.mxu0 0.0
        %526 = vmatprep.subr.mxu0 0.0
        %527 = vmatpush1.msra.mxu0 0.0
        %528 = vmatprep.subr.mxu0 0.0
        %529 = vmatpush1.msra.mxu0 0.0
        %530 = vmatprep.subr.mxu0 0.0
        %531 = vmatpush1.msra.mxu0 0.0
        %532 = vmatprep.subr.mxu0 0.0
        %533 = vmatpush1.msra.mxu0 0.0
        %534 = vmatprep.subr.mxu0 0.0
        %535 = vmatpush1.msra.mxu0 0.0
        %536 = vmatprep.subr.mxu0 0.0
        %537 = vmatpush1.msra.mxu0 0.0
        %538 = vmatprep.subr.mxu0 0.0
        %539 = vmatpush1.msra.mxu0 %v472
        %540 = vmatprep.subr.mxu0 0.0
        %541 = vmatpush1.msra.mxu0 %v471
        %542 = vmatprep.subr.mxu0 0.0
        %543 = vmatpush1.msra.mxu0 %v470
        %544 = vmatprep.subr.mxu0 0.0
        %545 = vmatpush1.msra.mxu0 %v469
        %546 = vmatprep.subr.mxu0 0.0
        %547 = vmatpush2.msra.mxu0 0.0
        %548 = vmatprep.subr.mxu0 0.0
        %549 = vmatpush2.msra.mxu0 0.0
        %550 = vmatprep.subr.mxu0 0.0
        %551 = vmatpush2.msra.mxu0 0.0
        %552 = vmatprep.subr.mxu0 0.0
        %553 = vmatpush2.msra.mxu0 0.0
        %554 = vmatprep.subr.mxu0 0.0
        %555 = vmatpush2.msra.mxu0 0.0
        %556 = vmatprep.subr.mxu0 0.0
        %557 = vmatpush2.msra.mxu0 0.0
        %558 = vmatprep.subr.mxu0 0.0
        %559 = vmatpush2.msra.mxu0 0.0
        %560 = vmatprep.subr.mxu0 0.0
        %561 = vmatpush2.msra.mxu0 0.0
        %562 = vmatprep.subr.mxu0 0.0
        %563 = vmatpush2.msra.mxu0 0.0
        %564 = vmatprep.subr.mxu0 0.0
        %565 = vmatpush2.msra.mxu0 0.0
        %566 = vmatprep.subr.mxu0 0.0
        %567 = vmatpush2.msra.mxu0 0.0
        %568 = vmatprep.subr.mxu0 0.0
        %569 = vmatpush2.msra.mxu0 0.0
        %570 = vmatprep.subr.mxu0 0.0
        %571 = vmatpush2.msra.mxu0 0.0
        %572 = vmatprep.subr.mxu0 0.0
        %573 = vmatpush2.msra.mxu0 0.0
        %574 = vmatprep.subr.mxu0 0.0
        %575 = vmatpush2.msra.mxu0 0.0
        %576 = vmatprep.subr.mxu0 0.0
        %577 = vmatpush2.msra.mxu0 0.0
        %578 = vmatprep.mubr.f32.mxu0 0.0
        %579 = vmatmul.mubr.f32.gmra.mxu0 %v503
        %v580 = vpop.f32.mrf.mxu0
        %v581 = vadd.f32 %v484, %v580
        %v582 = vpop.f32.mrf.mxu0
        %583 = vmatprep.mubr.f32.mxu0 0.0
        %584 = vmatmul.mubr.f32.gmra.mxu0 %v506
        %v585 = vpop.f32.mrf.mxu0
        %v586 = vadd.f32 %v489, %v585
        %v587 = vpop.f32.mrf.mxu0
        %588 = vmatprep.mubr.f32.mxu0 0.0
        %589 = vmatmul.mubr.f32.gmra.mxu0 %v509
        %v590 = vpop.f32.mrf.mxu0
        %v591 = vadd.f32 %v494, %v590
        %v592 = vpop.f32.mrf.mxu0
        %593 = vmatprep.mubr.f32.mxu0 0.0
        %594 = vmatmul.mubr.f32.gmra.mxu0 %v512
        %v595 = vpop.f32.mrf.mxu0
        %v596 = vadd.f32 %v499, %v595
        %v597 = vpop.f32.mrf.mxu0
        %598 = vdwg.mxu0
        %v599 = vtanh.pop %v581
        %v600 = vtanh.pop %v586
        %v601 = vtanh.pop %v591
        %v602 = vtanh.pop %v596
        %s603 = scalar_lea.vmem %s3, 32
        %v604 = vld [vmem:[%s603] sm:$0xff]
        %v605 = vld [vmem:[%s603 + $0x8] sm:$0xff]
        %v606 = vld [vmem:[%s603 + $0x10] sm:$0xff]
        %v607 = vld [vmem:[%s603 + $0x18] sm:$0xff]
        %s608 = scalar_lea.vmem %s4, 32
        %v609 = vld [vmem:[%s608] sm:$0xff]
        %v610 = vld [vmem:[%s608 + $0x8] sm:$0xff]
        %v611 = vld [vmem:[%s608 + $0x10] sm:$0xff]
        %v612 = vld [vmem:[%s608 + $0x18] sm:$0xff]
        %614 = vset.pattern.permute.xlu0 0
        %615 = vperm.xlu0 %614, %v609
        %v616 = vpop.permute.xlu0 %615
        %619 = vset.pattern.permute.xlu0 0
        %620 = vperm.xlu0 %619, %v610
        %v621 = vpop.permute.xlu0 %620
        %624 = vset.pattern.permute.xlu0 0
        %625 = vperm.xlu0 %624, %v611
        %v626 = vpop.permute.xlu0 %625
        %629 = vset.pattern.permute.xlu0 0
        %630 = vperm.xlu0 %629, %v612
        %v631 = vpop.permute.xlu0 %630
        %v634 = vsel %vm501, %v604, 0
        %v637 = vsel %vm501, %v605, 0
        %v640 = vsel %vm501, %v606, 0
        %v643 = vsel %vm501, %v607, 0
        %645 = vmatprep.subr.mxu0 0.0
        %646 = vmatpush1.msra.mxu0 0.0
        %647 = vmatprep.subr.mxu0 0.0
        %648 = vmatpush1.msra.mxu0 0.0
        %649 = vmatprep.subr.mxu0 0.0
        %650 = vmatpush1.msra.mxu0 0.0
        %651 = vmatprep.subr.mxu0 0.0
        %652 = vmatpush1.msra.mxu0 0.0
        %653 = vmatprep.subr.mxu0 0.0
        %654 = vmatpush1.msra.mxu0 0.0
        %655 = vmatprep.subr.mxu0 0.0
        %656 = vmatpush1.msra.mxu0 0.0
        %657 = vmatprep.subr.mxu0 0.0
        %658 = vmatpush1.msra.mxu0 0.0
        %659 = vmatprep.subr.mxu0 0.0
        %660 = vmatpush1.msra.mxu0 0.0
        %661 = vmatprep.subr.mxu0 0.0
        %662 = vmatpush1.msra.mxu0 0.0
        %663 = vmatprep.subr.mxu0 0.0
        %664 = vmatpush1.msra.mxu0 0.0
        %665 = vmatprep.subr.mxu0 0.0
        %666 = vmatpush1.msra.mxu0 0.0
        %667 = vmatprep.subr.mxu0 0.0
        %668 = vmatpush1.msra.mxu0 0.0
        %669 = vmatprep.subr.mxu0 0.0
        %670 = vmatpush1.msra.mxu0 %v602
        %671 = vmatprep.subr.mxu0 0.0
        %672 = vmatpush1.msra.mxu0 %v601
        %673 = vmatprep.subr.mxu0 0.0
        %674 = vmatpush1.msra.mxu0 %v600
        %675 = vmatprep.subr.mxu0 0.0
        %676 = vmatpush1.msra.mxu0 %v599
        %677 = vmatprep.subr.mxu0 0.0
        %678 = vmatpush2.msra.mxu0 0.0
        %679 = vmatprep.subr.mxu0 0.0
        %680 = vmatpush2.msra.mxu0 0.0
        %681 = vmatprep.subr.mxu0 0.0
        %682 = vmatpush2.msra.mxu0 0.0
        %683 = vmatprep.subr.mxu0 0.0
        %684 = vmatpush2.msra.mxu0 0.0
        %685 = vmatprep.subr.mxu0 0.0
        %686 = vmatpush2.msra.mxu0 0.0
        %687 = vmatprep.subr.mxu0 0.0
        %688 = vmatpush2.msra.mxu0 0.0
        %689 = vmatprep.subr.mxu0 0.0
        %690 = vmatpush2.msra.mxu0 0.0
        %691 = vmatprep.subr.mxu0 0.0
        %692 = vmatpush2.msra.mxu0 0.0
        %693 = vmatprep.subr.mxu0 0.0
        %694 = vmatpush2.msra.mxu0 0.0
        %695 = vmatprep.subr.mxu0 0.0
        %696 = vmatpush2.msra.mxu0 0.0
        %697 = vmatprep.subr.mxu0 0.0
        %698 = vmatpush2.msra.mxu0 0.0
        %699 = vmatprep.subr.mxu0 0.0
        %700 = vmatpush2.msra.mxu0 0.0
        %701 = vmatprep.subr.mxu0 0.0
        %702 = vmatpush2.msra.mxu0 0.0
        %703 = vmatprep.subr.mxu0 0.0
        %704 = vmatpush2.msra.mxu0 0.0
        %705 = vmatprep.subr.mxu0 0.0
        %706 = vmatpush2.msra.mxu0 0.0
        %707 = vmatprep.subr.mxu0 0.0
        %708 = vmatpush2.msra.mxu0 0.0
        %709 = vmatprep.mubr.f32.mxu0 0.0
        %710 = vmatmul.mubr.f32.gmra.mxu0 %v634
        %v711 = vpop.f32.mrf.mxu0
        %v712 = vadd.f32 %v616, %v711
        %v713 = vpop.f32.mrf.mxu0
        %714 = vmatprep.mubr.f32.mxu0 0.0
        %715 = vmatmul.mubr.f32.gmra.mxu0 %v637
        %v716 = vpop.f32.mrf.mxu0
        %v717 = vadd.f32 %v621, %v716
        %v718 = vpop.f32.mrf.mxu0
        %719 = vmatprep.mubr.f32.mxu0 0.0
        %720 = vmatmul.mubr.f32.gmra.mxu0 %v640
        %v721 = vpop.f32.mrf.mxu0
        %v722 = vadd.f32 %v626, %v721
        %v723 = vpop.f32.mrf.mxu0
        %724 = vmatprep.mubr.f32.mxu0 0.0
        %725 = vmatmul.mubr.f32.gmra.mxu0 %v643
        %v726 = vpop.f32.mrf.mxu0
        %v727 = vadd.f32 %v631, %v726
        %v728 = vpop.f32.mrf.mxu0
        %729 = vdwg.mxu0
        %v730 = vtanh.pop %v712
        %v731 = vtanh.pop %v717
        %v732 = vtanh.pop %v722
        %v733 = vtanh.pop %v727
        %v734 = vld [vmem:[%s5] sm:$0xf]
        %v735 = vld [vmem:[%s6] sm:$0xf]
        %737 = vset.pattern.permute.xlu0 0
        %738 = vperm.xlu0 %737, %v735
        %v739 = vpop.permute.xlu0 %738
        %v742 = vsel %vm501, %v734, 0
        %744 = vmatprep.subr.mxu0 0.0
        %745 = vmatpush1.msra.mxu0 0.0
        %746 = vmatprep.subr.mxu0 0.0
        %747 = vmatpush1.msra.mxu0 0.0
        %748 = vmatprep.subr.mxu0 0.0
        %749 = vmatpush1.msra.mxu0 0.0
        %750 = vmatprep.subr.mxu0 0.0
        %751 = vmatpush1.msra.mxu0 0.0
        %752 = vmatprep.subr.mxu0 0.0
        %753 = vmatpush1.msra.mxu0 0.0
        %754 = vmatprep.subr.mxu0 0.0
        %755 = vmatpush1.msra.mxu0 0.0
        %756 = vmatprep.subr.mxu0 0.0
        %757 = vmatpush1.msra.mxu0 0.0
        %758 = vmatprep.subr.mxu0 0.0
        %759 = vmatpush1.msra.mxu0 0.0
        %760 = vmatprep.subr.mxu0 0.0
        %761 = vmatpush1.msra.mxu0 0.0
        %762 = vmatprep.subr.mxu0 0.0
        %763 = vmatpush1.msra.mxu0 0.0
        %764 = vmatprep.subr.mxu0 0.0
        %765 = vmatpush1.msra.mxu0 0.0
        %766 = vmatprep.subr.mxu0 0.0
        %767 = vmatpush1.msra.mxu0 0.0
        %768 = vmatprep.subr.mxu0 0.0
        %769 = vmatpush1.msra.mxu0 %v733
        %770 = vmatprep.subr.mxu0 0.0
        %771 = vmatpush1.msra.mxu0 %v732
        %772 = vmatprep.subr.mxu0 0.0
        %773 = vmatpush1.msra.mxu0 %v731
        %774 = vmatprep.subr.mxu0 0.0
        %775 = vmatpush1.msra.mxu0 %v730
        %776 = vmatprep.subr.mxu0 0.0
        %777 = vmatpush2.msra.mxu0 0.0
        %778 = vmatprep.subr.mxu0 0.0
        %779 = vmatpush2.msra.mxu0 0.0
        %780 = vmatprep.subr.mxu0 0.0
        %781 = vmatpush2.msra.mxu0 0.0
        %782 = vmatprep.subr.mxu0 0.0
        %783 = vmatpush2.msra.mxu0 0.0
        %784 = vmatprep.subr.mxu0 0.0
        %785 = vmatpush2.msra.mxu0 0.0
        %786 = vmatprep.subr.mxu0 0.0
        %787 = vmatpush2.msra.mxu0 0.0
        %788 = vmatprep.subr.mxu0 0.0
        %789 = vmatpush2.msra.mxu0 0.0
        %790 = vmatprep.subr.mxu0 0.0
        %791 = vmatpush2.msra.mxu0 0.0
        %792 = vmatprep.subr.mxu0 0.0
        %793 = vmatpush2.msra.mxu0 0.0
        %794 = vmatprep.subr.mxu0 0.0
        %795 = vmatpush2.msra.mxu0 0.0
        %796 = vmatprep.subr.mxu0 0.0
        %797 = vmatpush2.msra.mxu0 0.0
        %798 = vmatprep.subr.mxu0 0.0
        %799 = vmatpush2.msra.mxu0 0.0
        %800 = vmatprep.subr.mxu0 0.0
        %801 = vmatpush2.msra.mxu0 0.0
        %802 = vmatprep.subr.mxu0 0.0
        %803 = vmatpush2.msra.mxu0 0.0
        %804 = vmatprep.subr.mxu0 0.0
        %805 = vmatpush2.msra.mxu0 0.0
        %806 = vmatprep.subr.mxu0 0.0
        %807 = vmatpush2.msra.mxu0 0.0
        %808 = vmatprep.mubr.f32.mxu0 0.0
        %809 = vmatmul.mubr.f32.gmra.mxu0 %v742
        %v810 = vpop.f32.mrf.mxu0
        %v811 = vadd.f32 %v739, %v810
        %v812 = vpop.f32.mrf.mxu0
        %813 = vdwg.mxu0
        %814 = vst [vmem:[%s272] sm:$0xf] %v811
        %s815 = sand.u32 %s181, 1
        %s816 = scalar_lea.sflag [#allocation3], %s815
        %s817 = sand.u32 %s181, 1
        %s818 = smul.addr %s817, 4
        %s819 = scalar_lea.vmem [#allocation2], %s818
        // Predicated region
        $region49: #{fitter_forward.1} parent=47 // pred_check
          %p820 = pneg %p191
        $region50: #{fitter_forward.1} parent=47 // pred_check_branch
          %822 = sbr.rel (%p820) target = $region52
        $region51: #{fitter_forward.1} parent=47 // pred_region
          %s824 = ssub.s32 64, 64
          %825 = vsyncadd %s816, %s824
          %s826 = smul.addr %s21, 64
          %s827 = scalar_lea.hbm %s7, %s826
          %s829 = sshll.u32 %s819, 4
          %s830 = int_to_ptr.vmem [resolvable:$true] %s829
          %832 = dma.vmem_to_hbm [thread:$0]  %s830, 64, %s827, %s816
        $region52: #{fitter_forward.1} parent=47 // pred_fallthru
          _
      $region48: #{fitter_forward.1} parent=5 // pred_fallthru
        _
      %p833 = scmp.le.s32.totalorder 2, %s16
      // Predicated region
      $region53: #{fitter_forward.1} parent=5 // pred_check
        %p834 = pneg %p833
      $region54: #{fitter_forward.1} parent=5 // pred_check_branch
        %836 = sbr.rel (%p834) target = $region56
      $region55: #{fitter_forward.1} parent=5 // pred_region
        %s837 = ssub.s32 %s16, 2
        // Predicated region
        $region57: #{fitter_forward.1} parent=55 // pred_check
          %p838 = pneg %p197
        $region58: #{fitter_forward.1} parent=55 // pred_check_branch
          %840 = sbr.rel (%p838) target = $region60
        $region59: #{fitter_forward.1} parent=55 // pred_region
          %s841 = sand.u32 %s182, 1
          %s842 = scalar_lea.sflag [#allocation3], %s841
          %s843 = sand.u32 %s182, 1
          %s844 = smul.addr %s843, 4
          %s845 = scalar_lea.vmem [#allocation2], %s844
          %846 = dma.done %s842, 64
        $region60: #{fitter_forward.1} parent=55 // pred_fallthru
          _
      $region56: #{fitter_forward.1} parent=5 // pred_fallthru
        _
    $region6: #{fitter_forward.1} parent=1 // loop_footer
      %s20 = sadd.s32 1, %s16
    $region7: #{fitter_forward.1} parent=1 // loop_footer_branch
      %15 = sbr.rel target = $region3
    $region8: #{fitter_forward.1} parent=1 // loop_exit
      _
    %847 = vsyncpa [#allocation3], 1
    %s848 = scalar_lea.sflag [#allocation3], 1
    %849 = vsyncpa %s848, 1

</llo_original>
